<compile_context>
chip_gen: v5e
topology: v5e:2x2
jax: 0.10.0
libtpu: 0.0.40
codegen_flags: <defaults>
</compile_context>

<pallas_src>
import functools
import math

import jax
import jax.numpy as jnp
from jax.experimental import pallas as pl
from jax.experimental.pallas import tpu as pltpu


# ----------------------------------------------------------------------------
# Kernel: one grid step == one batch element.
#   qkv_ref  : (3, 1, S, Din) f32   stacked [queries; keys; values] for batch b
#   wqkv_ref : (3, Din, D)    f32   stacked [Wq^T; Wk^T; Wv^T]
#   wot_ref  : (D, D)         f32   Wo^T
#   bias_ref : (1, Sq, Sk)    f32   additive mask bias (0 or -1e6)
#   out_ref  : (1, Sq, D)
# ----------------------------------------------------------------------------
def mha_kernel(qkv_ref, wqkv_ref, wot_ref, bias_ref, out_ref, *, num_heads):
    _, _, S, Din = qkv_ref.shape
    D = wqkv_ref.shape[-1]
    hd = D // num_heads

    x = qkv_ref[...].reshape(3, S, Din)          # drop the size-1 batch dim

    # Fused Q/K/V projection: one dot_general, full contraction width (K=Din),
    # heads stay packed along lanes.  (3, S, Din) @ (3, Din, D) -> (3, S, D).
    proj = jax.lax.dot_general(
        x, wqkv_ref[...], (((2,), (1,)), ((0,), (0,))),
        preferred_element_type=jnp.float32)
    q, k, v = proj[0], proj[1], proj[2]          # each (S, D), f32

    bias = bias_ref[...].reshape(S, S)           # (Sq, Sk) additive mask
    scale = jnp.float32(1.0 / math.sqrt(hd))

    # Per-head attention: split heads only here (static lane slices, no
    # transposes).  Softmax stays in f32 with an exact divide.
    ctx_heads = []
    for h in range(num_heads):
        sl = slice(h * hd, (h + 1) * hd)
        qh, kh, vh = q[:, sl], k[:, sl], v[:, sl]          # (S, hd)
        s = jax.lax.dot_general(qh, kh, (((1,), (1,)), ((), ())),
                                preferred_element_type=jnp.float32)
        s = s * scale + bias                               # (Sq, Sk)
        m = jnp.max(s, axis=-1, keepdims=True)
        e = jnp.exp(s - m)
        attn = e / jnp.sum(e, axis=-1, keepdims=True)      # dropout(p=0) == id
        ctx_heads.append(jnp.dot(attn, vh,
                                 preferred_element_type=jnp.float32))

    # Concat heads along lanes -> (Sq, D); single full-width output projection.
    ctx = jnp.concatenate(ctx_heads, axis=-1)
    out = jnp.dot(ctx, wot_ref[...], preferred_element_type=jnp.float32)
    out_ref[...] = out.reshape(out_ref.shape).astype(out_ref.dtype)


# ----------------------------------------------------------------------------
# Wrapper: stack activations/weights for the fused QKV projection, precompute
# the additive mask bias, launch a batch-parallel grid.
# ----------------------------------------------------------------------------
def multi_head_attention(queries, keys, values, valid_lens,
                         wq, wk, wv, wo, num_heads):
    B, Sq, Dq = queries.shape
    _, Sk, Dk = keys.shape
    Dv = values.shape[-1]
    D = wq.shape[0]                       # num_hiddens

    # TODO(synk): cross-attention with mismatched q/k/v shapes needs an
    # unfused (three-matmul) projection path; the fused-stack layout below
    # requires matching shapes, which holds for this module's usage.
    assert Sq == Sk and Dq == Dk == Dv, "fused QKV path expects matching shapes"

    # torch Linear weights are (out, in); pre-transpose so the kernel does
    # x @ W^T as a plain matmul, and stack Q/K/V weights for the fused path.
    xqkv = jnp.stack([queries, keys, values], axis=0)        # (3, B, S, Din)
    wqkv = jnp.stack([wq.T, wk.T, wv.T], axis=0)              # (3, Din, D)
    wot = wo.T                                                # (D, D)

    # Additive attention-mask bias (compile-time-static shapes): key position
    # j is visible iff j < valid_lens[b]; masked entries get -1e6 (matches the
    # d2l masked_softmax reference).
    vl = valid_lens.astype(jnp.int32)
    col = jax.lax.broadcasted_iota(jnp.int32, (B, Sq, Sk), 2)
    bias = jnp.where(col < vl[:, None, None], 0.0, -1e6).astype(jnp.float32)

    kernel = functools.partial(mha_kernel, num_heads=num_heads)
    return pl.pallas_call(
        kernel,
        out_shape=jax.ShapeDtypeStruct((B, Sq, D), queries.dtype),
        grid=(B,),
        in_specs=[
            pl.BlockSpec((3, 1, Sq, Dq), lambda b: (0, b, 0, 0)),
            pl.BlockSpec((3, Dq, D), lambda b: (0, 0, 0)),
            pl.BlockSpec((D, D), lambda b: (0, 0)),
            pl.BlockSpec((1, Sq, Sk), lambda b: (b, 0, 0)),
        ],
        out_specs=pl.BlockSpec((1, Sq, D), lambda b: (b, 0, 0)),
        compiler_params=pltpu.CompilerParams(
            dimension_semantics=("parallel",)),   # v7x: one batch per TC
    )(xqkv, wqkv, wot, bias)


# ----------------------------------------------------------------------------
# Plain-JAX helpers (glue): positional encoding + reference implementation
# ----------------------------------------------------------------------------
def positional_encoding(num_hiddens, max_len=1000):
    P = jnp.zeros((1, max_len, num_hiddens), jnp.float32)
    pos = jnp.arange(max_len, dtype=jnp.float32).reshape(-1, 1)
    div = jnp.power(10000.0,
                    jnp.arange(0, num_hiddens, 2, dtype=jnp.float32) / num_hiddens)
    X = pos / div
    P = P.at[:, :, 0::2].set(jnp.sin(X))
    P = P.at[:, :, 1::2].set(jnp.cos(X))
    return P


def _transpose_qkv(X, num_heads):
    X = X.reshape(X.shape[0], X.shape[1], num_heads, -1)
    X = jnp.transpose(X, (0, 2, 1, 3))
    return X.reshape(-1, X.shape[2], X.shape[3])


def _transpose_output(X, num_heads):
    X = X.reshape(-1, num_heads, X.shape[1], X.shape[2])
    X = jnp.transpose(X, (0, 2, 1, 3))
    return X.reshape(X.shape[0], X.shape[1], -1)


def reference_mha(queries, keys, values, valid_lens, wq, wk, wv, wo, num_heads):
    Q = _transpose_qkv(queries @ wq.T, num_heads)
    K = _transpose_qkv(keys @ wk.T, num_heads)
    V = _transpose_qkv(values @ wv.T, num_heads)
    vl = jnp.repeat(valid_lens, num_heads, axis=0)          # (B*H,)
    d = Q.shape[-1]
    scores = jnp.einsum('bqd,bkd->bqk', Q, K) / math.sqrt(d)
    col = jnp.arange(scores.shape[-1])[None, None, :]
    mask = col < vl[:, None, None]
    scores = jnp.where(mask, scores, -1e6)
    attn = jax.nn.softmax(scores, axis=-1)
    ctx = jnp.einsum('bqk,bkd->bqd', attn, V)
    out = _transpose_output(ctx, num_heads)
    return out @ wo.T


# ----------------------------------------------------------------------------
# Main
# ----------------------------------------------------------------------------
if __name__ == "__main__":
    B, S, D, H = 2, 8, 32, 4          # batch, seq (num_steps), num_hiddens, heads
    key = jax.random.PRNGKey(0)
    k1, k2, k3, k4 = jax.random.split(key, 4)

    # Deterministic nn.Linear-style weights (no bias), shape (out, in).
    bound = 1.0 / math.sqrt(D)
    wq = jax.random.uniform(k1, (D, D), jnp.float32, -bound, bound)
    wk = jax.random.uniform(k2, (D, D), jnp.float32, -bound, bound)
    wv = jax.random.uniform(k3, (D, D), jnp.float32, -bound, bound)
    wo = jax.random.uniform(k4, (D, D), jnp.float32, -bound, bound)

    # X = PositionalEncoding(D, 0)(zeros((1, S, D))), broadcast to batch B.
    P = positional_encoding(D)
    X = jnp.zeros((1, S, D), jnp.float32) + P[:, :S, :]
    X = jnp.broadcast_to(X, (B, S, D))

    valid_lens = jnp.array([3, 2], dtype=jnp.int32)

    out = multi_head_attention(X, X, X, valid_lens, wq, wk, wv, wo, H)
    out = jax.block_until_ready(out)

    ref = reference_mha(X, X, X, valid_lens, wq, wk, wv, wo, H)
    assert out.shape == (B, S, D)
    # Exact softmax divide -> tight tolerance restored.
    assert jnp.allclose(out, ref, atol=1e-4, rtol=1e-4), "mismatch vs JAX reference"

    print("KERNEL_OK")
</pallas_src>

<mosaic_0001>
module attributes {stable_mosaic.version = 11 : i64} {
  func.func @mha_kernel(%arg0: i32, %arg1: memref<3x1x8x32xf32, #tpu.memory_space<vmem>>, %arg2: memref<3x32x32xf32, #tpu.memory_space<vmem>>, %arg3: memref<32x32xf32, #tpu.memory_space<vmem>>, %arg4: memref<1x8x8xf32, #tpu.memory_space<vmem>>, %arg5: memref<1x8x32xf32, #tpu.memory_space<vmem>>) attributes {dimension_semantics = [#tpu.dimension_semantics<parallel>], iteration_bounds = array<i64: 2>, scalar_prefetch = 0 : i64, scratch_operands = 0 : i64, tpu.core_type = #tpu.core_type<tc>, window_params = [{transform_indices = @transform_0, window_bounds = array<i64: 3, 1, 8, 32>}, {pipeline_mode = #tpu.pipeline_mode<synchronous>, transform_indices = @transform_1, window_bounds = array<i64: 3, 32, 32>}, {pipeline_mode = #tpu.pipeline_mode<synchronous>, transform_indices = @transform_2, window_bounds = array<i64: 32, 32>}, {transform_indices = @transform_3, window_bounds = array<i64: 1, 8, 8>}, {transform_indices = @transform_4, window_bounds = array<i64: 1, 8, 32>}]} {
    %c0 = arith.constant 0 : index
    %c0_0 = arith.constant 0 : index
    %c0_1 = arith.constant 0 : index
    %c0_2 = arith.constant 0 : index
    %0 = vector.load %arg1[%c0, %c0_0, %c0_1, %c0_2] : memref<3x1x8x32xf32, #tpu.memory_space<vmem>>, vector<3x1x8x32xf32>
    %1 = vector.shape_cast %0 : vector<3x1x8x32xf32> to vector<3x8x32xf32>
    %c0_3 = arith.constant 0 : index
    %c0_4 = arith.constant 0 : index
    %c0_5 = arith.constant 0 : index
    %2 = vector.load %arg2[%c0_3, %c0_4, %c0_5] : memref<3x32x32xf32, #tpu.memory_space<vmem>>, vector<3x32x32xf32>
    %cst = arith.constant dense<0.000000e+00> : vector<3x8x32xf32>
    %3 = tpu.matmul %1, %2, %cst {dimension_numbers = #tpu.dot_dimension_numbers<[2], [1], [1], [2], [0, 0, 0, 1, 1, 2], [0], [0]>} : vector<3x8x32xf32>, vector<3x32x32xf32>, vector<3x8x32xf32> -> vector<3x8x32xf32>
    %4 = vector.extract_strided_slice %3 {offsets = [0, 0, 0], sizes = [1, 8, 32], strides = [1, 1, 1]} : vector<3x8x32xf32> to vector<1x8x32xf32>
    %5 = vector.shape_cast %4 : vector<1x8x32xf32> to vector<8x32xf32>
    %6 = vector.extract_strided_slice %3 {offsets = [1, 0, 0], sizes = [1, 8, 32], strides = [1, 1, 1]} : vector<3x8x32xf32> to vector<1x8x32xf32>
    %7 = vector.shape_cast %6 : vector<1x8x32xf32> to vector<8x32xf32>
    %8 = vector.extract_strided_slice %3 {offsets = [2, 0, 0], sizes = [1, 8, 32], strides = [1, 1, 1]} : vector<3x8x32xf32> to vector<1x8x32xf32>
    %9 = vector.shape_cast %8 : vector<1x8x32xf32> to vector<8x32xf32>
    %c0_6 = arith.constant 0 : index
    %c0_7 = arith.constant 0 : index
    %c0_8 = arith.constant 0 : index
    %10 = vector.load %arg4[%c0_6, %c0_7, %c0_8] : memref<1x8x8xf32, #tpu.memory_space<vmem>>, vector<1x8x8xf32>
    %11 = vector.shape_cast %10 : vector<1x8x8xf32> to vector<8x8xf32>
    %12 = vector.extract_strided_slice %5 {offsets = [0, 0], sizes = [8, 8], strides = [1, 1]} : vector<8x32xf32> to vector<8x8xf32>
    %13 = vector.extract_strided_slice %7 {offsets = [0, 0], sizes = [8, 8], strides = [1, 1]} : vector<8x32xf32> to vector<8x8xf32>
    %14 = vector.extract_strided_slice %9 {offsets = [0, 0], sizes = [8, 8], strides = [1, 1]} : vector<8x32xf32> to vector<8x8xf32>
    %cst_9 = arith.constant dense<0.000000e+00> : vector<8x8xf32>
    %15 = tpu.matmul %12, %13, %cst_9 {dimension_numbers = #tpu.dot_dimension_numbers<[1], [1], [0], [0], [0, 0, 1, 0], [], []>} : vector<8x8xf32>, vector<8x8xf32>, vector<8x8xf32> -> vector<8x8xf32>
    %cst_10 = arith.constant 0.353553385 : f32
    %16 = vector.broadcast %cst_10 : f32 to vector<8x8xf32>
    %17 = arith.mulf %15, %16 : vector<8x8xf32>
    %18 = arith.addf %17, %11 : vector<8x8xf32>
    %cst_11 = arith.constant dense<0xFF800000> : vector<8xf32>
    %19 = vector.multi_reduction <maximumf>, %18, %cst_11 [1] : vector<8x8xf32> to vector<8xf32>
    %20 = vector.shape_cast %19 : vector<8xf32> to vector<8x1xf32>
    %21 = vector.broadcast %20 : vector<8x1xf32> to vector<8x8xf32>
    %22 = arith.subf %18, %21 : vector<8x8xf32>
    %23 = math.exp %22 : vector<8x8xf32>
    %cst_12 = arith.constant dense<0.000000e+00> : vector<8xf32>
    %24 = vector.multi_reduction <add>, %23, %cst_12 [1] : vector<8x8xf32> to vector<8xf32>
    %25 = vector.shape_cast %24 : vector<8xf32> to vector<8x1xf32>
    %26 = vector.broadcast %25 : vector<8x1xf32> to vector<8x8xf32>
    %27 = arith.divf %23, %26 : vector<8x8xf32>
    %cst_13 = arith.constant dense<0.000000e+00> : vector<8x8xf32>
    %28 = tpu.matmul %27, %14, %cst_13 {dimension_numbers = #tpu.dot_dimension_numbers<[1], [0], [0], [1], [0, 0, 1, 1], [], []>} : vector<8x8xf32>, vector<8x8xf32>, vector<8x8xf32> -> vector<8x8xf32>
    %29 = vector.extract_strided_slice %5 {offsets = [0, 8], sizes = [8, 8], strides = [1, 1]} : vector<8x32xf32> to vector<8x8xf32>
    %30 = vector.extract_strided_slice %7 {offsets = [0, 8], sizes = [8, 8], strides = [1, 1]} : vector<8x32xf32> to vector<8x8xf32>
    %31 = vector.extract_strided_slice %9 {offsets = [0, 8], sizes = [8, 8], strides = [1, 1]} : vector<8x32xf32> to vector<8x8xf32>
    %cst_14 = arith.constant dense<0.000000e+00> : vector<8x8xf32>
    %32 = tpu.matmul %29, %30, %cst_14 {dimension_numbers = #tpu.dot_dimension_numbers<[1], [1], [0], [0], [0, 0, 1, 0], [], []>} : vector<8x8xf32>, vector<8x8xf32>, vector<8x8xf32> -> vector<8x8xf32>
    %cst_15 = arith.constant 0.353553385 : f32
    %33 = vector.broadcast %cst_15 : f32 to vector<8x8xf32>
    %34 = arith.mulf %32, %33 : vector<8x8xf32>
    %35 = arith.addf %34, %11 : vector<8x8xf32>
    %cst_16 = arith.constant dense<0xFF800000> : vector<8xf32>
    %36 = vector.multi_reduction <maximumf>, %35, %cst_16 [1] : vector<8x8xf32> to vector<8xf32>
    %37 = vector.shape_cast %36 : vector<8xf32> to vector<8x1xf32>
    %38 = vector.broadcast %37 : vector<8x1xf32> to vector<8x8xf32>
    %39 = arith.subf %35, %38 : vector<8x8xf32>
    %40 = math.exp %39 : vector<8x8xf32>
    %cst_17 = arith.constant dense<0.000000e+00> : vector<8xf32>
    %41 = vector.multi_reduction <add>, %40, %cst_17 [1] : vector<8x8xf32> to vector<8xf32>
    %42 = vector.shape_cast %41 : vector<8xf32> to vector<8x1xf32>
    %43 = vector.broadcast %42 : vector<8x1xf32> to vector<8x8xf32>
    %44 = arith.divf %40, %43 : vector<8x8xf32>
    %cst_18 = arith.constant dense<0.000000e+00> : vector<8x8xf32>
    %45 = tpu.matmul %44, %31, %cst_18 {dimension_numbers = #tpu.dot_dimension_numbers<[1], [0], [0], [1], [0, 0, 1, 1], [], []>} : vector<8x8xf32>, vector<8x8xf32>, vector<8x8xf32> -> vector<8x8xf32>
    %46 = vector.extract_strided_slice %5 {offsets = [0, 16], sizes = [8, 8], strides = [1, 1]} : vector<8x32xf32> to vector<8x8xf32>
    %47 = vector.extract_strided_slice %7 {offsets = [0, 16], sizes = [8, 8], strides = [1, 1]} : vector<8x32xf32> to vector<8x8xf32>
    %48 = vector.extract_strided_slice %9 {offsets = [0, 16], sizes = [8, 8], strides = [1, 1]} : vector<8x32xf32> to vector<8x8xf32>
    %cst_19 = arith.constant dense<0.000000e+00> : vector<8x8xf32>
    %49 = tpu.matmul %46, %47, %cst_19 {dimension_numbers = #tpu.dot_dimension_numbers<[1], [1], [0], [0], [0, 0, 1, 0], [], []>} : vector<8x8xf32>, vector<8x8xf32>, vector<8x8xf32> -> vector<8x8xf32>
    %cst_20 = arith.constant 0.353553385 : f32
    %50 = vector.broadcast %cst_20 : f32 to vector<8x8xf32>
    %51 = arith.mulf %49, %50 : vector<8x8xf32>
    %52 = arith.addf %51, %11 : vector<8x8xf32>
    %cst_21 = arith.constant dense<0xFF800000> : vector<8xf32>
    %53 = vector.multi_reduction <maximumf>, %52, %cst_21 [1] : vector<8x8xf32> to vector<8xf32>
    %54 = vector.shape_cast %53 : vector<8xf32> to vector<8x1xf32>
    %55 = vector.broadcast %54 : vector<8x1xf32> to vector<8x8xf32>
    %56 = arith.subf %52, %55 : vector<8x8xf32>
    %57 = math.exp %56 : vector<8x8xf32>
    %cst_22 = arith.constant dense<0.000000e+00> : vector<8xf32>
    %58 = vector.multi_reduction <add>, %57, %cst_22 [1] : vector<8x8xf32> to vector<8xf32>
    %59 = vector.shape_cast %58 : vector<8xf32> to vector<8x1xf32>
    %60 = vector.broadcast %59 : vector<8x1xf32> to vector<8x8xf32>
    %61 = arith.divf %57, %60 : vector<8x8xf32>
    %cst_23 = arith.constant dense<0.000000e+00> : vector<8x8xf32>
    %62 = tpu.matmul %61, %48, %cst_23 {dimension_numbers = #tpu.dot_dimension_numbers<[1], [0], [0], [1], [0, 0, 1, 1], [], []>} : vector<8x8xf32>, vector<8x8xf32>, vector<8x8xf32> -> vector<8x8xf32>
    %63 = vector.extract_strided_slice %5 {offsets = [0, 24], sizes = [8, 8], strides = [1, 1]} : vector<8x32xf32> to vector<8x8xf32>
    %64 = vector.extract_strided_slice %7 {offsets = [0, 24], sizes = [8, 8], strides = [1, 1]} : vector<8x32xf32> to vector<8x8xf32>
    %65 = vector.extract_strided_slice %9 {offsets = [0, 24], sizes = [8, 8], strides = [1, 1]} : vector<8x32xf32> to vector<8x8xf32>
    %cst_24 = arith.constant dense<0.000000e+00> : vector<8x8xf32>
    %66 = tpu.matmul %63, %64, %cst_24 {dimension_numbers = #tpu.dot_dimension_numbers<[1], [1], [0], [0], [0, 0, 1, 0], [], []>} : vector<8x8xf32>, vector<8x8xf32>, vector<8x8xf32> -> vector<8x8xf32>
    %cst_25 = arith.constant 0.353553385 : f32
    %67 = vector.broadcast %cst_25 : f32 to vector<8x8xf32>
    %68 = arith.mulf %66, %67 : vector<8x8xf32>
    %69 = arith.addf %68, %11 : vector<8x8xf32>
    %cst_26 = arith.constant dense<0xFF800000> : vector<8xf32>
    %70 = vector.multi_reduction <maximumf>, %69, %cst_26 [1] : vector<8x8xf32> to vector<8xf32>
    %71 = vector.shape_cast %70 : vector<8xf32> to vector<8x1xf32>
    %72 = vector.broadcast %71 : vector<8x1xf32> to vector<8x8xf32>
    %73 = arith.subf %69, %72 : vector<8x8xf32>
    %74 = math.exp %73 : vector<8x8xf32>
    %cst_27 = arith.constant dense<0.000000e+00> : vector<8xf32>
    %75 = vector.multi_reduction <add>, %74, %cst_27 [1] : vector<8x8xf32> to vector<8xf32>
    %76 = vector.shape_cast %75 : vector<8xf32> to vector<8x1xf32>
    %77 = vector.broadcast %76 : vector<8x1xf32> to vector<8x8xf32>
    %78 = arith.divf %74, %77 : vector<8x8xf32>
    %cst_28 = arith.constant dense<0.000000e+00> : vector<8x8xf32>
    %79 = tpu.matmul %78, %65, %cst_28 {dimension_numbers = #tpu.dot_dimension_numbers<[1], [0], [0], [1], [0, 0, 1, 1], [], []>} : vector<8x8xf32>, vector<8x8xf32>, vector<8x8xf32> -> vector<8x8xf32>
    %80 = tpu.concatenate %28, %45, %62, %79 in 1 : vector<8x8xf32>, vector<8x8xf32>, vector<8x8xf32>, vector<8x8xf32> -> vector<8x32xf32>
    %c0_29 = arith.constant 0 : index
    %c0_30 = arith.constant 0 : index
    %81 = vector.load %arg3[%c0_29, %c0_30] : memref<32x32xf32, #tpu.memory_space<vmem>>, vector<32x32xf32>
    %cst_31 = arith.constant dense<0.000000e+00> : vector<8x32xf32>
    %82 = tpu.matmul %80, %81, %cst_31 {dimension_numbers = #tpu.dot_dimension_numbers<[1], [0], [0], [1], [0, 0, 1, 1], [], []>} : vector<8x32xf32>, vector<32x32xf32>, vector<8x32xf32> -> vector<8x32xf32>
    %83 = vector.shape_cast %82 : vector<8x32xf32> to vector<1x8x32xf32>
    %c0_32 = arith.constant 0 : index
    %c0_33 = arith.constant 0 : index
    %c0_34 = arith.constant 0 : index
    %84 = vector.load %arg5[%c0_32, %c0_33, %c0_34] : memref<1x8x32xf32, #tpu.memory_space<vmem>>, vector<1x8x32xf32>
    tpu.vector_store %arg5[%c0_32, %c0_33, %c0_34], %83 {strides = array<i32>} : memref<1x8x32xf32, #tpu.memory_space<vmem>>, vector<1x8x32xf32>,
    return
  }
  func.func @transform_0(%arg0: i32) -> (i32, i32, i32, i32) {
    %c0_i32 = arith.constant 0 : i32
    %c0_i32_0 = arith.constant 0 : i32
    %c0_i32_1 = arith.constant 0 : i32
    %c0_i32_2 = arith.constant 0 : i32
    return %c0_i32, %arg0, %c0_i32_0, %c0_i32_1 : i32, i32, i32, i32
  }
  func.func @transform_1(%arg0: i32) -> (i32, i32, i32) {
    %c0_i32 = arith.constant 0 : i32
    %c0_i32_0 = arith.constant 0 : i32
    %c0_i32_1 = arith.constant 0 : i32
    %c0_i32_2 = arith.constant 0 : i32
    return %c0_i32, %c0_i32_0, %c0_i32_1 : i32, i32, i32
  }
  func.func @transform_2(%arg0: i32) -> (i32, i32) {
    %c0_i32 = arith.constant 0 : i32
    %c0_i32_0 = arith.constant 0 : i32
    %c0_i32_1 = arith.constant 0 : i32
    return %c0_i32, %c0_i32_0 : i32, i32
  }
  func.func @transform_3(%arg0: i32) -> (i32, i32, i32) {
    %c0_i32 = arith.constant 0 : i32
    %c0_i32_0 = arith.constant 0 : i32
    %c0_i32_1 = arith.constant 0 : i32
    return %arg0, %c0_i32, %c0_i32_0 : i32, i32, i32
  }
  func.func @transform_4(%arg0: i32) -> (i32, i32, i32) {
    %c0_i32 = arith.constant 0 : i32
    %c0_i32_0 = arith.constant 0 : i32
    %c0_i32_1 = arith.constant 0 : i32
    return %arg0, %c0_i32, %c0_i32_0 : i32, i32, i32
  }
}

</mosaic_0001>

<llo_original>
// kernel: tpu_custom_call.1
$region0: #{tpu_custom_call.1}
  #allocation0 [shape = 'u32[]', space=smem, size = 0x4, offset = 0x4, fixed_abs, tag = 'smem constant byte address 0x4 - core index']
  #allocation1 [shape = 'u32[72,128]{1,0:T(1,128)}', space=vmem, size = 0x9000, scoped, tag = 'internal scratch']
  %s0 = inlined_call_operand.hbm [shape: f32[3,2,8,32], index: 0, kind: input, shape index: {}]
  %s1 = inlined_call_operand.hbm [shape: f32[3,32,32], index: 1, kind: input, shape index: {}]
  %s2 = inlined_call_operand.hbm [shape: f32[32,32], index: 2, kind: input, shape index: {}]
  %s3 = inlined_call_operand.hbm [shape: f32[2,8,8], index: 3, kind: input, shape index: {}]
  %s4 = inlined_call_operand.hbm [shape: f32[2,8,32], index: 4, kind: output, shape index: {}]
  %s5 = sld [smem:[#allocation0]]
  $region65: #{tpu_custom_call.1} parent=0
    _
  %s7 = ssub.s32 1, %s5
  %s8 = scalar_select 0, %s7, %s5
  $region1: #{tpu_custom_call.1} parent=0
    #allocation2 [shape = 'u8[24576]{0}', space=vmem, size = 0x6000, scoped, tag = 'input window, operand 0']
    #allocation3 [shape = 's32[2]{0}', space=sflag, size = 0x8, scoped, tag = 'scoped memory for tpu_custom_call.1']
    #allocation4 [shape = 's32[2]{0}', space=sflag, size = 0x8, scoped, tag = 'scoped memory for tpu_custom_call.1']
    #allocation5 [shape = 'u8[49152]{0}', space=vmem, size = 0xc000, scoped, tag = 'input window, operand 1, single buffered']
    #allocation6 [shape = 's32[1]{0}', space=sflag, size = 0x4, scoped, tag = 'scoped memory for tpu_custom_call.1']
    #allocation7 [shape = 'u8[16384]{0}', space=vmem, size = 0x4000, scoped, tag = 'input window, operand 2, single buffered']
    #allocation8 [shape = 'u8[8192]{0}', space=vmem, size = 0x2000, scoped, tag = 'input window, operand 3']
    #allocation9 [shape = 's32[2]{0}', space=sflag, size = 0x8, scoped, tag = 'scoped memory for tpu_custom_call.1']
    #allocation10 [shape = 'u8[8192]{0}', space=vmem, size = 0x2000, scoped, tag = 'output window, operand 0']
    %9 = vsyncpa [#allocation3], 0
    %s10 = scalar_lea.sflag [#allocation3], 1
    %11 = vsyncpa %s10, 0
    %12 = vsyncpa [#allocation6], 0
    %13 = vsyncpa [#allocation9], 0
    %s14 = scalar_lea.sflag [#allocation9], 1
    %15 = vsyncpa %s14, 0
    %16 = vsyncpa [#allocation4], 0
    %s17 = scalar_lea.sflag [#allocation4], 1
    %18 = vsyncpa %s17, 0
    loop: start=0, step=1, limit=4
    $region2: #{tpu_custom_call.1} parent=1 // loop_pre_header
      _
    $region3: #{tpu_custom_call.1} parent=1 // loop_header
      %s20 = sphi 0, %s24
      %p21 = scmp.ge.s32.totalorder %s20, 4
      %s30 = sphi 0, %s32
      %s33 = sphi 0, %s30
      %s34 = sphi 0, %s33
      %s50 = sphi 0, %s34
      %s54 = sphi 0, %s54
      %s56 = sphi 0, %s54
      %s57 = sphi 0, %s56
      %s71 = sphi 0, %s57
      %s75 = sphi 0, %s75
      %s77 = sphi 0, %s75
      %s78 = sphi 0, %s77
      %s92 = sphi 0, %s78
      %s98 = sphi 0, %s100
      %s101 = sphi 0, %s98
      %s102 = sphi 0, %s101
      %s118 = sphi 0, %s102
      %s124 = sphi 0, %s126
      %s127 = sphi 0, %s124
      %s128 = sphi 0, %s127
      %s144 = sphi 0, %s128
    $region4: #{tpu_custom_call.1} parent=1 // loop_header_branch
      %23 = sbr.rel (%p21) target = $region8
    $region5: #{tpu_custom_call.1} parent=1 // loop_body
      %s25 = ssub.s32 %s20, 1
      %s26 = ssub.s32 %s20, 2
      %s27 = sadd.s32 %s20, 1
      %s28 = ssub.s32 %s20, %s27
      %p29 = scmp.eq.s32.totalorder %s28, 0
      %s31 = sadd.s32 %s30, 1
      %s32 = scalar_select %p29, %s30, %s31
      %p35 = pneg %p29
      %p36 = scmp.eq.s32.totalorder %s20, 1
      %p37 = por %p35, %p36
      %p38 = scmp.ne.s32.totalorder %s30, %s33
      %p39 = scmp.eq.s32.totalorder %s20, 0
      %p40 = por %p38, %p39
      %p41 = scmp.ne.s32.totalorder %s30, %s33
      %p42 = scmp.eq.s32.totalorder %s25, 1
      %p43 = por %p41, %p42
      %p44 = scmp.ne.s32.totalorder %s33, %s34
      %p45 = scmp.eq.s32.totalorder %s25, 0
      %p46 = por %p44, %p45
      %p47 = scmp.ne.s32.totalorder %s33, %s34
      %p48 = scmp.eq.s32.totalorder %s26, 1
      %p49 = por %p47, %p48
      %p51 = scmp.ne.s32.totalorder %s34, %s50
      %p52 = scmp.eq.s32.totalorder %s26, 0
      %p53 = por %p51, %p52
      %s55 = sadd.s32 %s54, 1
      %p58 = scmp.eq.s32.totalorder %s20, 1
      %p59 = scmp.ne.s32.totalorder %s54, %s56
      %p60 = scmp.eq.s32.totalorder %s20, 0
      %p61 = por %p59, %p60
      %p62 = scmp.ne.s32.totalorder %s54, %s56
      %p63 = scmp.eq.s32.totalorder %s25, 1
      %p64 = por %p62, %p63
      %p65 = scmp.ne.s32.totalorder %s56, %s57
      %p66 = scmp.eq.s32.totalorder %s25, 0
      %p67 = por %p65, %p66
      %p68 = scmp.ne.s32.totalorder %s56, %s57
      %p69 = scmp.eq.s32.totalorder %s26, 1
      %p70 = por %p68, %p69
      %p72 = scmp.ne.s32.totalorder %s57, %s71
      %p73 = scmp.eq.s32.totalorder %s26, 0
      %p74 = por %p72, %p73
      %s76 = sadd.s32 %s75, 1
      %p79 = scmp.eq.s32.totalorder %s20, 1
      %p80 = scmp.ne.s32.totalorder %s75, %s77
      %p81 = scmp.eq.s32.totalorder %s20, 0
      %p82 = por %p80, %p81
      %p83 = scmp.ne.s32.totalorder %s75, %s77
      %p84 = scmp.eq.s32.totalorder %s25, 1
      %p85 = por %p83, %p84
      %p86 = scmp.ne.s32.totalorder %s77, %s78
      %p87 = scmp.eq.s32.totalorder %s25, 0
      %p88 = por %p86, %p87
      %p89 = scmp.ne.s32.totalorder %s77, %s78
      %p90 = scmp.eq.s32.totalorder %s26, 1
      %p91 = por %p89, %p90
      %p93 = scmp.ne.s32.totalorder %s78, %s92
      %p94 = scmp.eq.s32.totalorder %s26, 0
      %p95 = por %p93, %p94
      %s96 = ssub.s32 %s20, %s27
      %p97 = scmp.eq.s32.totalorder %s96, 0
      %s99 = sadd.s32 %s98, 1
      %s100 = scalar_select %p97, %s98, %s99
      %p103 = pneg %p97
      %p104 = scmp.eq.s32.totalorder %s20, 1
      %p105 = por %p103, %p104
      %p106 = scmp.ne.s32.totalorder %s98, %s101
      %p107 = scmp.eq.s32.totalorder %s20, 0
      %p108 = por %p106, %p107
      %p109 = scmp.ne.s32.totalorder %s98, %s101
      %p110 = scmp.eq.s32.totalorder %s25, 1
      %p111 = por %p109, %p110
      %p112 = scmp.ne.s32.totalorder %s101, %s102
      %p113 = scmp.eq.s32.totalorder %s25, 0
      %p114 = por %p112, %p113
      %p115 = scmp.ne.s32.totalorder %s101, %s102
      %p116 = scmp.eq.s32.totalorder %s26, 1
      %p117 = por %p115, %p116
      %p119 = scmp.ne.s32.totalorder %s102, %s118
      %p120 = scmp.eq.s32.totalorder %s26, 0
      %p121 = por %p119, %p120
      %s122 = ssub.s32 %s20, %s27
      %p123 = scmp.eq.s32.totalorder %s122, 0
      %s125 = sadd.s32 %s124, 1
      %s126 = scalar_select %p123, %s124, %s125
      %p129 = pneg %p123
      %p130 = scmp.eq.s32.totalorder %s20, 1
      %p131 = por %p129, %p130
      %p132 = scmp.ne.s32.totalorder %s124, %s127
      %p133 = scmp.eq.s32.totalorder %s20, 0
      %p134 = por %p132, %p133
      %p135 = scmp.ne.s32.totalorder %s124, %s127
      %p136 = scmp.eq.s32.totalorder %s25, 1
      %p137 = por %p135, %p136
      %p138 = scmp.ne.s32.totalorder %s127, %s128
      %p139 = scmp.eq.s32.totalorder %s25, 0
      %p140 = por %p138, %p139
      %p141 = scmp.ne.s32.totalorder %s127, %s128
      %p142 = scmp.eq.s32.totalorder %s26, 1
      %p143 = por %p141, %p142
      %p145 = scmp.ne.s32.totalorder %s128, %s144
      %p146 = scmp.eq.s32.totalorder %s26, 0
      %p147 = por %p145, %p146
      %p148 = scmp.le.s32.totalorder 1, %s20
      %p149 = scmp.lt.s32.totalorder %s20, 3
      %p150 = pnand %p148, %p149
      %p151 = pneg %p150
      // Predicated region
      $region9: #{tpu_custom_call.1} parent=5 // pred_check
        _
      $region10: #{tpu_custom_call.1} parent=5 // pred_check_branch
        %153 = sbr.rel (%p150) target = $region12
      $region11: #{tpu_custom_call.1} parent=5 // pred_region
        %s154 = ssub.s32 %s20, 1
        // Predicated region
        $region13: #{tpu_custom_call.1} parent=11 // pred_check
          %p155 = pneg %p67
        $region14: #{tpu_custom_call.1} parent=11 // pred_check_branch
          %157 = sbr.rel (%p155) target = $region16
        $region15: #{tpu_custom_call.1} parent=11 // pred_region
          %159 = vsyncadd [#allocation6], 0
          %s160 = sshll.u32 %s1, 4
          %s161 = int_to_ptr.hbm [resolvable:$true] %s160
          %s162 = sshll.u32 [#allocation5], 4
          %s163 = int_to_ptr.vmem [resolvable:$true] %s162
          %168 = dma.hbm_to_vmem [thread:$0]  %s161, 1536, %s163, [#allocation6], 128, 128, 8
        $region16: #{tpu_custom_call.1} parent=11 // pred_fallthru
          _
        // Predicated region
        $region17: #{tpu_custom_call.1} parent=11 // pred_check
          %p169 = pneg %p88
        $region18: #{tpu_custom_call.1} parent=11 // pred_check_branch
          %171 = sbr.rel (%p169) target = $region20
        $region19: #{tpu_custom_call.1} parent=11 // pred_region
          %173 = vsyncadd [#allocation6], 0
          %s174 = sshll.u32 %s2, 4
          %s175 = int_to_ptr.hbm [resolvable:$true] %s174
          %s176 = sshll.u32 [#allocation7], 4
          %s177 = int_to_ptr.vmem [resolvable:$true] %s176
          %182 = dma.hbm_to_vmem [thread:$0]  %s175, 512, %s177, [#allocation6], 128, 128, 8
        $region20: #{tpu_custom_call.1} parent=11 // pred_fallthru
          _
      $region12: #{tpu_custom_call.1} parent=5 // pred_fallthru
        _
      %p183 = scmp.lt.s32.totalorder %s20, 2
      // Predicated region
      $region21: #{tpu_custom_call.1} parent=5 // pred_check
        %p184 = pneg %p183
      $region22: #{tpu_custom_call.1} parent=5 // pred_check_branch
        %186 = sbr.rel (%p184) target = $region24
      $region23: #{tpu_custom_call.1} parent=5 // pred_region
        // Predicated region
        $region25: #{tpu_custom_call.1} parent=23 // pred_check
          %p187 = pneg %p40
        $region26: #{tpu_custom_call.1} parent=23 // pred_check_branch
          %189 = sbr.rel (%p187) target = $region28
        $region27: #{tpu_custom_call.1} parent=23 // pred_region
          %s190 = sand.u32 %s30, 1
          %s191 = scalar_lea.sflag [#allocation3], %s190
          %s192 = sand.u32 %s30, 1
          %s193 = smul.addr %s192, 24
          %s194 = scalar_lea.vmem [#allocation2], %s193
          %196 = vsyncadd %s191, 0
          %s197 = smul.addr %s20, 8
          %s198 = scalar_lea.hbm %s0, %s197
          %s199 = sshll.u32 %s198, 4
          %s200 = int_to_ptr.hbm [resolvable:$true] %s199
          %s201 = sshll.u32 %s194, 4
          %s202 = int_to_ptr.vmem [resolvable:$true] %s201
          %207 = dma.hbm_to_vmem [thread:$0]  %s200, 384, %s202, %s191, 256, 128, 8
        $region28: #{tpu_custom_call.1} parent=23 // pred_fallthru
          _
        // Predicated region
        $region29: #{tpu_custom_call.1} parent=23 // pred_check
          %p208 = pneg %p108
        $region30: #{tpu_custom_call.1} parent=23 // pred_check_branch
          %210 = sbr.rel (%p208) target = $region32
        $region31: #{tpu_custom_call.1} parent=23 // pred_region
          %s211 = sand.u32 %s98, 1
          %s212 = scalar_lea.sflag [#allocation9], %s211
          %s213 = sand.u32 %s98, 1
          %s214 = smul.addr %s213, 8
          %s215 = scalar_lea.vmem [#allocation8], %s214
          %217 = vsyncadd %s212, 0
          %s218 = smul.addr %s20, 8
          %s219 = scalar_lea.hbm %s3, %s218
          %s221 = sshll.u32 %s219, 4
          %s222 = int_to_ptr.hbm [resolvable:$true] %s221
          %s223 = sshll.u32 %s215, 4
          %s224 = int_to_ptr.vmem [resolvable:$true] %s223
          %226 = dma.hbm_to_vmem [thread:$0]  %s222, 128, %s224, %s212
        $region32: #{tpu_custom_call.1} parent=23 // pred_fallthru
          _
      $region24: #{tpu_custom_call.1} parent=5 // pred_fallthru
        _
      %p227 = scmp.le.s32.totalorder 1, %s20
      %p228 = scmp.lt.s32.totalorder %s20, 3
      %p229 = pnand %p227, %p228
      %p230 = pneg %p229
      // Predicated region
      $region33: #{tpu_custom_call.1} parent=5 // pred_check
        _
      $region34: #{tpu_custom_call.1} parent=5 // pred_check_branch
        %232 = sbr.rel (%p229) target = $region36
      $region35: #{tpu_custom_call.1} parent=5 // pred_region
        %s233 = ssub.s32 %s20, 1
        %s234 = sand.u32 %s33, 1
        %s235 = scalar_lea.sflag [#allocation3], %s234
        %s236 = sand.u32 %s33, 1
        %s237 = smul.addr %s236, 24
        %s238 = scalar_lea.vmem [#allocation2], %s237
        // Predicated region
        $region37: #{tpu_custom_call.1} parent=35 // pred_check
          %p239 = pneg %p46
        $region38: #{tpu_custom_call.1} parent=35 // pred_check_branch
          %241 = sbr.rel (%p239) target = $region40
        $region39: #{tpu_custom_call.1} parent=35 // pred_region
          %243 = dma.done %s235, 384
        $region40: #{tpu_custom_call.1} parent=35 // pred_fallthru
          _
        // Predicated region
        $region41: #{tpu_custom_call.1} parent=35 // pred_check
          %p244 = pneg %p67
        $region42: #{tpu_custom_call.1} parent=35 // pred_check_branch
          %246 = sbr.rel (%p244) target = $region44
        $region43: #{tpu_custom_call.1} parent=35 // pred_region
          %248 = dma.done [#allocation6], 1536
        $region44: #{tpu_custom_call.1} parent=35 // pred_fallthru
          _
        // Predicated region
        $region45: #{tpu_custom_call.1} parent=35 // pred_check
          %p249 = pneg %p88
        $region46: #{tpu_custom_call.1} parent=35 // pred_check_branch
          %251 = sbr.rel (%p249) target = $region48
        $region47: #{tpu_custom_call.1} parent=35 // pred_region
          %253 = dma.done [#allocation6], 512
        $region48: #{tpu_custom_call.1} parent=35 // pred_fallthru
          _
        %s254 = sand.u32 %s101, 1
        %s255 = scalar_lea.sflag [#allocation9], %s254
        %s256 = sand.u32 %s101, 1
        %s257 = smul.addr %s256, 8
        %s258 = scalar_lea.vmem [#allocation8], %s257
        // Predicated region
        $region49: #{tpu_custom_call.1} parent=35 // pred_check
          %p259 = pneg %p114
        $region50: #{tpu_custom_call.1} parent=35 // pred_check_branch
          %261 = sbr.rel (%p259) target = $region52
        $region51: #{tpu_custom_call.1} parent=35 // pred_region
          %263 = dma.done %s255, 128
        $region52: #{tpu_custom_call.1} parent=35 // pred_fallthru
          _
        %s264 = sand.u32 %s33, 1
        %s265 = scalar_lea.sflag [#allocation3], %s264
        %s266 = sand.u32 %s33, 1
        %s267 = smul.addr %s266, 24
        %s268 = scalar_lea.vmem [#allocation2], %s267
        %p269 = pneg %p46
        %p270 = pneg %p43
        %p271 = pneg %p67
        %p272 = pneg %p64
        %p273 = pneg %p88
        %p274 = pneg %p85
        %s275 = sand.u32 %s101, 1
        %s276 = scalar_lea.sflag [#allocation9], %s275
        %s277 = sand.u32 %s101, 1
        %s278 = smul.addr %s277, 8
        %s279 = scalar_lea.vmem [#allocation8], %s278
        %p280 = pneg %p114
        %p281 = pneg %p111
        %p282 = pneg %p140
        %p283 = pneg %p137
        %s284 = sand.u32 %s127, 1
        %s285 = scalar_lea.sflag [#allocation4], %s284
        %s286 = sand.u32 %s127, 1
        %s287 = smul.addr %s286, 8
        %s288 = scalar_lea.vmem [#allocation10], %s287
        %v289 = vld [vmem:[%s238] sm:$0xff]
        %v290 = vld [vmem:[%s238 + $0x8] sm:$0xff]
        %v291 = vld [vmem:[%s238 + $0x10] sm:$0xff]
        %v292 = vld [vmem:[#allocation5] sm:$0xff]
        %v293 = vld [vmem:[#allocation5 + $0x8] sm:$0xff]
        %v294 = vld [vmem:[#allocation5 + $0x10] sm:$0xff]
        %v295 = vld [vmem:[#allocation5 + $0x18] sm:$0xff]
        %v296 = vld [vmem:[#allocation5 + $0x20] sm:$0xff]
        %v297 = vld [vmem:[#allocation5 + $0x28] sm:$0xff]
        %v298 = vld [vmem:[#allocation5 + $0x30] sm:$0xff]
        %v299 = vld [vmem:[#allocation5 + $0x38] sm:$0xff]
        %v300 = vld [vmem:[#allocation5 + $0x40] sm:$0xff]
        %v301 = vld [vmem:[#allocation5 + $0x48] sm:$0xff]
        %v302 = vld [vmem:[#allocation5 + $0x50] sm:$0xff]
        %v303 = vld [vmem:[#allocation5 + $0x58] sm:$0xff]
        %vm304 = vcmask 261120
        %v306 = vsel %vm304, %v289, 0
        %308 = vmatpush.msra.mxu0 0.0
        %309 = vmatpush.msra.mxu0 0.0
        %310 = vmatpush.msra.mxu0 0.0
        %311 = vmatpush.msra.mxu0 0.0
        %312 = vmatpush.msra.mxu0 0.0
        %313 = vmatpush.msra.mxu0 0.0
        %314 = vmatpush.msra.mxu0 0.0
        %315 = vmatpush.msra.mxu0 0.0
        %316 = vmatpush.msra.mxu0 0.0
        %317 = vmatpush.msra.mxu0 0.0
        %318 = vmatpush.msra.mxu0 0.0
        %319 = vmatpush.msra.mxu0 0.0
        %320 = vmatpush.msra.mxu0 %v295
        %321 = vmatpush.msra.mxu0 %v294
        %322 = vmatpush.msra.mxu0 %v293
        %323 = vmatpush.msra.mxu0 %v292
        %324 = vmatmul.f32.gmra.mxu0 %v306
        %v325 = vpop.f32.mrf.mxu0
        %v326 = vadd.f32 0.0, %v325
        %327 = vdwg.mxu0
        %v329 = vsel %vm304, %v290, 0
        %331 = vmatpush.msra.mxu0 0.0
        %332 = vmatpush.msra.mxu0 0.0
        %333 = vmatpush.msra.mxu0 0.0
        %334 = vmatpush.msra.mxu0 0.0
        %335 = vmatpush.msra.mxu0 0.0
        %336 = vmatpush.msra.mxu0 0.0
        %337 = vmatpush.msra.mxu0 0.0
        %338 = vmatpush.msra.mxu0 0.0
        %339 = vmatpush.msra.mxu0 0.0
        %340 = vmatpush.msra.mxu0 0.0
        %341 = vmatpush.msra.mxu0 0.0
        %342 = vmatpush.msra.mxu0 0.0
        %343 = vmatpush.msra.mxu0 %v299
        %344 = vmatpush.msra.mxu0 %v298
        %345 = vmatpush.msra.mxu0 %v297
        %346 = vmatpush.msra.mxu0 %v296
        %347 = vmatmul.f32.gmra.mxu0 %v329
        %v348 = vpop.f32.mrf.mxu0
        %v349 = vadd.f32 0.0, %v348
        %350 = vdwg.mxu0
        %v352 = vsel %vm304, %v291, 0
        %354 = vmatpush.msra.mxu0 0.0
        %355 = vmatpush.msra.mxu0 0.0
        %356 = vmatpush.msra.mxu0 0.0
        %357 = vmatpush.msra.mxu0 0.0
        %358 = vmatpush.msra.mxu0 0.0
        %359 = vmatpush.msra.mxu0 0.0
        %360 = vmatpush.msra.mxu0 0.0
        %361 = vmatpush.msra.mxu0 0.0
        %362 = vmatpush.msra.mxu0 0.0
        %363 = vmatpush.msra.mxu0 0.0
        %364 = vmatpush.msra.mxu0 0.0
        %365 = vmatpush.msra.mxu0 0.0
        %366 = vmatpush.msra.mxu0 %v303
        %367 = vmatpush.msra.mxu0 %v302
        %368 = vmatpush.msra.mxu0 %v301
        %369 = vmatpush.msra.mxu0 %v300
        %370 = vmatmul.f32.gmra.mxu0 %v352
        %v371 = vpop.f32.mrf.mxu0
        %v372 = vadd.f32 0.0, %v371
        %373 = vdwg.mxu0
        %v374 = vld [vmem:[%s258] sm:$0xff]
        %vm375 = vcmask 64512
        %v377 = vsel %vm375, %v326, 0
        %v380 = vsel %vm375, %v349, 0
        %382 = vmatpush.xpose.msra.mxu0 0.0
        %383 = vmatpush.xpose.msra.mxu0 0.0
        %384 = vmatpush.xpose.msra.mxu0 0.0
        %385 = vmatpush.xpose.msra.mxu0 0.0
        %386 = vmatpush.xpose.msra.mxu0 0.0
        %387 = vmatpush.xpose.msra.mxu0 0.0
        %388 = vmatpush.xpose.msra.mxu0 0.0
        %389 = vmatpush.xpose.msra.mxu0 0.0
        %390 = vmatpush.xpose.msra.mxu0 0.0
        %391 = vmatpush.xpose.msra.mxu0 0.0
        %392 = vmatpush.xpose.msra.mxu0 0.0
        %393 = vmatpush.xpose.msra.mxu0 0.0
        %394 = vmatpush.xpose.msra.mxu0 0.0
        %395 = vmatpush.xpose.msra.mxu0 0.0
        %396 = vmatpush.xpose.msra.mxu0 0.0
        %397 = vmatpush.xpose.msra.mxu0 %v380
        %398 = vmatmul.f32.gmra.mxu0 %v377
        %v399 = vpop.f32.mrf.mxu0
        %v400 = vadd.f32 0.0, %v399
        %401 = vdwg.mxu0
        %v402 = vmul.f32 %v400, 0.35355338
        %v403 = vadd.f32 %v402, %v374
        %v404 = vsel %vm375, %v403, -inf
        %405 = vmax.xlane.f32.xlu0 %v404
        %v406 = vpop.xlane.xlu0 %405
        %v407 = vsub.f32 %v403, %v406
        %v408 = vmul.f32 %v407, 1.442695
        %v409 = vpow.pop %v408
        %v410 = vsel %vm375, %v409, 0.0
        %411 = vadd.xlane.f32.xlu0 %v410
        %v412 = vpop.xlane.xlu0 %411
        %v413 = vrcp.pop %v412
        %v414 = vmul.f32 %v412, %v413
        %v415 = vsub.f32 1.0, %v414
        %v416 = vmul.f32 %v413, %v415
        %v417 = vadd.f32 %v413, %v416
        %vm418 = vweird.f32 %v412
        %vm419 = vweird.f32 %v413
        %vm420 = vmor %vm418, %vm419
        %v421 = vsel %vm420, %v413, %v417
        %v422 = vand.u32 2147483647, %v412
        %vm423 = vcmp.eq.f32.partialorder %v422, 8.507059e+37
        %v424 = vand.u32 %v412, 2147483648
        %v425 = vor.u32 1.1754944e-38, %v424
        %v426 = vsel %vm423, %v425, %v421
        %v427 = vmul.f32 %v409, %v426
        %v429 = vsel %vm375, %v427, 0
        %431 = vmatpush.msra.mxu0 0.0
        %432 = vmatpush.msra.mxu0 0.0
        %433 = vmatpush.msra.mxu0 0.0
        %434 = vmatpush.msra.mxu0 0.0
        %435 = vmatpush.msra.mxu0 0.0
        %436 = vmatpush.msra.mxu0 0.0
        %437 = vmatpush.msra.mxu0 0.0
        %438 = vmatpush.msra.mxu0 0.0
        %439 = vmatpush.msra.mxu0 0.0
        %440 = vmatpush.msra.mxu0 0.0
        %441 = vmatpush.msra.mxu0 0.0
        %442 = vmatpush.msra.mxu0 0.0
        %443 = vmatpush.msra.mxu0 0.0
        %444 = vmatpush.msra.mxu0 0.0
        %445 = vmatpush.msra.mxu0 0.0
        %446 = vmatpush.msra.mxu0 %v372
        %447 = vmatmul.f32.gmra.mxu0 %v429
        %v448 = vpop.f32.mrf.mxu0
        %v449 = vadd.f32 0.0, %v448
        %450 = vdwg.mxu0
        %451 = vrot.lane.b32.xlu0 %v326, 120
        %v452 = vpop.permute.xlu0 %451
        %453 = vrot.lane.b32.xlu0 %v349, 120
        %v454 = vpop.permute.xlu0 %453
        %v455 = vsel %vm375, %v452, 0
        %v457 = vsel %vm375, %v454, 0
        %459 = vmatpush.xpose.msra.mxu0 0.0
        %460 = vmatpush.xpose.msra.mxu0 0.0
        %461 = vmatpush.xpose.msra.mxu0 0.0
        %462 = vmatpush.xpose.msra.mxu0 0.0
        %463 = vmatpush.xpose.msra.mxu0 0.0
        %464 = vmatpush.xpose.msra.mxu0 0.0
        %465 = vmatpush.xpose.msra.mxu0 0.0
        %466 = vmatpush.xpose.msra.mxu0 0.0
        %467 = vmatpush.xpose.msra.mxu0 0.0
        %468 = vmatpush.xpose.msra.mxu0 0.0
        %469 = vmatpush.xpose.msra.mxu0 0.0
        %470 = vmatpush.xpose.msra.mxu0 0.0
        %471 = vmatpush.xpose.msra.mxu0 0.0
        %472 = vmatpush.xpose.msra.mxu0 0.0
        %473 = vmatpush.xpose.msra.mxu0 0.0
        %474 = vmatpush.xpose.msra.mxu0 %v457
        %475 = vmatmul.f32.gmra.mxu0 %v455
        %v476 = vpop.f32.mrf.mxu0
        %v477 = vadd.f32 0.0, %v476
        %478 = vdwg.mxu0
        %v479 = vmul.f32 %v477, 0.35355338
        %v480 = vadd.f32 %v479, %v374
        %v481 = vsel %vm375, %v480, -inf
        %482 = vmax.xlane.f32.xlu0 %v481
        %v483 = vpop.xlane.xlu0 %482
        %v484 = vsub.f32 %v480, %v483
        %v485 = vmul.f32 %v484, 1.442695
        %v486 = vpow.pop %v485
        %v487 = vsel %vm375, %v486, 0.0
        %488 = vadd.xlane.f32.xlu0 %v487
        %v489 = vpop.xlane.xlu0 %488
        %v490 = vrcp.pop %v489
        %v491 = vmul.f32 %v489, %v490
        %v492 = vsub.f32 1.0, %v491
        %v493 = vmul.f32 %v490, %v492
        %v494 = vadd.f32 %v490, %v493
        %vm495 = vweird.f32 %v489
        %vm496 = vweird.f32 %v490
        %vm497 = vmor %vm495, %vm496
        %v498 = vsel %vm497, %v490, %v494
        %v499 = vand.u32 2147483647, %v489
        %vm500 = vcmp.eq.f32.partialorder %v499, 8.507059e+37
        %v501 = vand.u32 %v489, 2147483648
        %v502 = vor.u32 1.1754944e-38, %v501
        %v503 = vsel %vm500, %v502, %v498
        %v504 = vmul.f32 %v486, %v503
        %506 = vrot.lane.b32.xlu0 %v372, 120
        %v507 = vpop.permute.xlu0 %506
        %v510 = vsel %vm375, %v504, 0
        %512 = vmatpush.msra.mxu0 0.0
        %513 = vmatpush.msra.mxu0 0.0
        %514 = vmatpush.msra.mxu0 0.0
        %515 = vmatpush.msra.mxu0 0.0
        %516 = vmatpush.msra.mxu0 0.0
        %517 = vmatpush.msra.mxu0 0.0
        %518 = vmatpush.msra.mxu0 0.0
        %519 = vmatpush.msra.mxu0 0.0
        %520 = vmatpush.msra.mxu0 0.0
        %521 = vmatpush.msra.mxu0 0.0
        %522 = vmatpush.msra.mxu0 0.0
        %523 = vmatpush.msra.mxu0 0.0
        %524 = vmatpush.msra.mxu0 0.0
        %525 = vmatpush.msra.mxu0 0.0
        %526 = vmatpush.msra.mxu0 0.0
        %527 = vmatpush.msra.mxu0 %v507
        %528 = vmatmul.f32.gmra.mxu0 %v510
        %v529 = vpop.f32.mrf.mxu0
        %v530 = vadd.f32 0.0, %v529
        %531 = vdwg.mxu0
        %532 = vrot.lane.b32.xlu0 %v326, 112
        %v533 = vpop.permute.xlu0 %532
        %534 = vrot.lane.b32.xlu0 %v349, 112
        %v535 = vpop.permute.xlu0 %534
        %v536 = vsel %vm375, %v533, 0
        %v538 = vsel %vm375, %v535, 0
        %540 = vmatpush.xpose.msra.mxu0 0.0
        %541 = vmatpush.xpose.msra.mxu0 0.0
        %542 = vmatpush.xpose.msra.mxu0 0.0
        %543 = vmatpush.xpose.msra.mxu0 0.0
        %544 = vmatpush.xpose.msra.mxu0 0.0
        %545 = vmatpush.xpose.msra.mxu0 0.0
        %546 = vmatpush.xpose.msra.mxu0 0.0
        %547 = vmatpush.xpose.msra.mxu0 0.0
        %548 = vmatpush.xpose.msra.mxu0 0.0
        %549 = vmatpush.xpose.msra.mxu0 0.0
        %550 = vmatpush.xpose.msra.mxu0 0.0
        %551 = vmatpush.xpose.msra.mxu0 0.0
        %552 = vmatpush.xpose.msra.mxu0 0.0
        %553 = vmatpush.xpose.msra.mxu0 0.0
        %554 = vmatpush.xpose.msra.mxu0 0.0
        %555 = vmatpush.xpose.msra.mxu0 %v538
        %556 = vmatmul.f32.gmra.mxu0 %v536
        %v557 = vpop.f32.mrf.mxu0
        %v558 = vadd.f32 0.0, %v557
        %559 = vdwg.mxu0
        %v560 = vmul.f32 %v558, 0.35355338
        %v561 = vadd.f32 %v560, %v374
        %v562 = vsel %vm375, %v561, -inf
        %563 = vmax.xlane.f32.xlu0 %v562
        %v564 = vpop.xlane.xlu0 %563
        %v565 = vsub.f32 %v561, %v564
        %v566 = vmul.f32 %v565, 1.442695
        %v567 = vpow.pop %v566
        %v568 = vsel %vm375, %v567, 0.0
        %569 = vadd.xlane.f32.xlu0 %v568
        %v570 = vpop.xlane.xlu0 %569
        %v571 = vrcp.pop %v570
        %v572 = vmul.f32 %v570, %v571
        %v573 = vsub.f32 1.0, %v572
        %v574 = vmul.f32 %v571, %v573
        %v575 = vadd.f32 %v571, %v574
        %vm576 = vweird.f32 %v570
        %vm577 = vweird.f32 %v571
        %vm578 = vmor %vm576, %vm577
        %v579 = vsel %vm578, %v571, %v575
        %v580 = vand.u32 2147483647, %v570
        %vm581 = vcmp.eq.f32.partialorder %v580, 8.507059e+37
        %v582 = vand.u32 %v570, 2147483648
        %v583 = vor.u32 1.1754944e-38, %v582
        %v584 = vsel %vm581, %v583, %v579
        %v585 = vmul.f32 %v567, %v584
        %586 = vrot.lane.b32.xlu0 %v372, 112
        %v587 = vpop.permute.xlu0 %586
        %v590 = vsel %vm375, %v585, 0
        %592 = vmatpush.msra.mxu0 0.0
        %593 = vmatpush.msra.mxu0 0.0
        %594 = vmatpush.msra.mxu0 0.0
        %595 = vmatpush.msra.mxu0 0.0
        %596 = vmatpush.msra.mxu0 0.0
        %597 = vmatpush.msra.mxu0 0.0
        %598 = vmatpush.msra.mxu0 0.0
        %599 = vmatpush.msra.mxu0 0.0
        %600 = vmatpush.msra.mxu0 0.0
        %601 = vmatpush.msra.mxu0 0.0
        %602 = vmatpush.msra.mxu0 0.0
        %603 = vmatpush.msra.mxu0 0.0
        %604 = vmatpush.msra.mxu0 0.0
        %605 = vmatpush.msra.mxu0 0.0
        %606 = vmatpush.msra.mxu0 0.0
        %607 = vmatpush.msra.mxu0 %v587
        %608 = vmatmul.f32.gmra.mxu0 %v590
        %v609 = vpop.f32.mrf.mxu0
        %v610 = vadd.f32 0.0, %v609
        %611 = vdwg.mxu0
        %612 = vrot.lane.b32.xlu0 %v326, 104
        %v613 = vpop.permute.xlu0 %612
        %614 = vrot.lane.b32.xlu0 %v349, 104
        %v615 = vpop.permute.xlu0 %614
        %v616 = vsel %vm375, %v613, 0
        %v618 = vsel %vm375, %v615, 0
        %620 = vmatpush.xpose.msra.mxu0 0.0
        %621 = vmatpush.xpose.msra.mxu0 0.0
        %622 = vmatpush.xpose.msra.mxu0 0.0
        %623 = vmatpush.xpose.msra.mxu0 0.0
        %624 = vmatpush.xpose.msra.mxu0 0.0
        %625 = vmatpush.xpose.msra.mxu0 0.0
        %626 = vmatpush.xpose.msra.mxu0 0.0
        %627 = vmatpush.xpose.msra.mxu0 0.0
        %628 = vmatpush.xpose.msra.mxu0 0.0
        %629 = vmatpush.xpose.msra.mxu0 0.0
        %630 = vmatpush.xpose.msra.mxu0 0.0
        %631 = vmatpush.xpose.msra.mxu0 0.0
        %632 = vmatpush.xpose.msra.mxu0 0.0
        %633 = vmatpush.xpose.msra.mxu0 0.0
        %634 = vmatpush.xpose.msra.mxu0 0.0
        %635 = vmatpush.xpose.msra.mxu0 %v618
        %636 = vmatmul.f32.gmra.mxu0 %v616
        %v637 = vpop.f32.mrf.mxu0
        %v638 = vadd.f32 0.0, %v637
        %639 = vdwg.mxu0
        %v640 = vmul.f32 %v638, 0.35355338
        %v641 = vadd.f32 %v640, %v374
        %v642 = vsel %vm375, %v641, -inf
        %643 = vmax.xlane.f32.xlu0 %v642
        %v644 = vpop.xlane.xlu0 %643
        %v645 = vsub.f32 %v641, %v644
        %v646 = vmul.f32 %v645, 1.442695
        %v647 = vpow.pop %v646
        %v648 = vsel %vm375, %v647, 0.0
        %649 = vadd.xlane.f32.xlu0 %v648
        %v650 = vpop.xlane.xlu0 %649
        %v651 = vrcp.pop %v650
        %v652 = vmul.f32 %v650, %v651
        %v653 = vsub.f32 1.0, %v652
        %v654 = vmul.f32 %v651, %v653
        %v655 = vadd.f32 %v651, %v654
        %vm656 = vweird.f32 %v650
        %vm657 = vweird.f32 %v651
        %vm658 = vmor %vm656, %vm657
        %v659 = vsel %vm658, %v651, %v655
        %v660 = vand.u32 2147483647, %v650
        %vm661 = vcmp.eq.f32.partialorder %v660, 8.507059e+37
        %v662 = vand.u32 %v650, 2147483648
        %v663 = vor.u32 1.1754944e-38, %v662
        %v664 = vsel %vm661, %v663, %v659
        %v665 = vmul.f32 %v647, %v664
        %666 = vrot.lane.b32.xlu0 %v372, 104
        %v667 = vpop.permute.xlu0 %666
        %v670 = vsel %vm375, %v665, 0
        %672 = vmatpush.msra.mxu0 0.0
        %673 = vmatpush.msra.mxu0 0.0
        %674 = vmatpush.msra.mxu0 0.0
        %675 = vmatpush.msra.mxu0 0.0
        %676 = vmatpush.msra.mxu0 0.0
        %677 = vmatpush.msra.mxu0 0.0
        %678 = vmatpush.msra.mxu0 0.0
        %679 = vmatpush.msra.mxu0 0.0
        %680 = vmatpush.msra.mxu0 0.0
        %681 = vmatpush.msra.mxu0 0.0
        %682 = vmatpush.msra.mxu0 0.0
        %683 = vmatpush.msra.mxu0 0.0
        %684 = vmatpush.msra.mxu0 0.0
        %685 = vmatpush.msra.mxu0 0.0
        %686 = vmatpush.msra.mxu0 0.0
        %687 = vmatpush.msra.mxu0 %v667
        %688 = vmatmul.f32.gmra.mxu0 %v670
        %v689 = vpop.f32.mrf.mxu0
        %v690 = vadd.f32 0.0, %v689
        %691 = vdwg.mxu0
        %693 = vrot.lane.b32.xlu0 %v530, 8
        %v694 = vpop.permute.xlu0 %693
        %697 = vrot.lane.b32.xlu0 %v610, 16
        %v698 = vpop.permute.xlu0 %697
        %701 = vrot.lane.b32.xlu0 %v690, 24
        %v702 = vpop.permute.xlu0 %701
        %v704 = vsel %vm375, %v449, %v694
        %vm705 = vcmask 130048
        %v706 = vsel %vm705, %v704, %v698
        %vm707 = vcmask 195584
        %v708 = vsel %vm707, %v706, %v702
        %v709 = vld [vmem:[#allocation7] sm:$0xff]
        %v710 = vld [vmem:[#allocation7 + $0x8] sm:$0xff]
        %v711 = vld [vmem:[#allocation7 + $0x10] sm:$0xff]
        %v712 = vld [vmem:[#allocation7 + $0x18] sm:$0xff]
        %v714 = vsel %vm304, %v708, 0
        %716 = vmatpush.msra.mxu0 0.0
        %717 = vmatpush.msra.mxu0 0.0
        %718 = vmatpush.msra.mxu0 0.0
        %719 = vmatpush.msra.mxu0 0.0
        %720 = vmatpush.msra.mxu0 0.0
        %721 = vmatpush.msra.mxu0 0.0
        %722 = vmatpush.msra.mxu0 0.0
        %723 = vmatpush.msra.mxu0 0.0
        %724 = vmatpush.msra.mxu0 0.0
        %725 = vmatpush.msra.mxu0 0.0
        %726 = vmatpush.msra.mxu0 0.0
        %727 = vmatpush.msra.mxu0 0.0
        %728 = vmatpush.msra.mxu0 %v712
        %729 = vmatpush.msra.mxu0 %v711
        %730 = vmatpush.msra.mxu0 %v710
        %731 = vmatpush.msra.mxu0 %v709
        %732 = vmatmul.f32.gmra.mxu0 %v714
        %v733 = vpop.f32.mrf.mxu0
        %v734 = vadd.f32 0.0, %v733
        %735 = vdwg.mxu0
        %736 = vst.msk [vmem:[%s288] sm:$0xff] %vm304, %v734
        %s737 = sand.u32 %s127, 1
        %s738 = scalar_lea.sflag [#allocation4], %s737
        %s739 = sand.u32 %s127, 1
        %s740 = smul.addr %s739, 8
        %s741 = scalar_lea.vmem [#allocation10], %s740
        // Predicated region
        $region53: #{tpu_custom_call.1} parent=35 // pred_check
          %p742 = pneg %p137
        $region54: #{tpu_custom_call.1} parent=35 // pred_check_branch
          %744 = sbr.rel (%p742) target = $region56
        $region55: #{tpu_custom_call.1} parent=35 // pred_region
          %746 = vsyncadd %s738, 0
          %s747 = smul.addr %s25, 8
          %s748 = scalar_lea.hbm %s4, %s747
          %s750 = sshll.u32 %s741, 4
          %s751 = int_to_ptr.vmem [resolvable:$true] %s750
          %s752 = sshll.u32 %s748, 4
          %s753 = int_to_ptr.hbm [resolvable:$true] %s752
          %755 = dma.vmem_to_hbm [thread:$0]  %s751, 128, %s753, %s738
        $region56: #{tpu_custom_call.1} parent=35 // pred_fallthru
          _
      $region36: #{tpu_custom_call.1} parent=5 // pred_fallthru
        _
      %p756 = scmp.le.s32.totalorder 2, %s20
      // Predicated region
      $region57: #{tpu_custom_call.1} parent=5 // pred_check
        %p757 = pneg %p756
      $region58: #{tpu_custom_call.1} parent=5 // pred_check_branch
        %759 = sbr.rel (%p757) target = $region60
      $region59: #{tpu_custom_call.1} parent=5 // pred_region
        %s760 = ssub.s32 %s20, 2
        // Predicated region
        $region61: #{tpu_custom_call.1} parent=59 // pred_check
          %p761 = pneg %p143
        $region62: #{tpu_custom_call.1} parent=59 // pred_check_branch
          %763 = sbr.rel (%p761) target = $region64
        $region63: #{tpu_custom_call.1} parent=59 // pred_region
          %s764 = sand.u32 %s128, 1
          %s765 = scalar_lea.sflag [#allocation4], %s764
          %s766 = sand.u32 %s128, 1
          %s767 = smul.addr %s766, 8
          %s768 = scalar_lea.vmem [#allocation10], %s767
          %770 = dma.done %s765, 128
        $region64: #{tpu_custom_call.1} parent=59 // pred_fallthru
          _
      $region60: #{tpu_custom_call.1} parent=5 // pred_fallthru
        _
    $region6: #{tpu_custom_call.1} parent=1 // loop_footer
      %s24 = sadd.s32 1, %s20
    $region7: #{tpu_custom_call.1} parent=1 // loop_footer_branch
      %19 = sbr.rel target = $region3
    $region8: #{tpu_custom_call.1} parent=1 // loop_exit
      _
    %771 = vsyncpa [#allocation3], 1
    %s772 = scalar_lea.sflag [#allocation3], 1
    %773 = vsyncpa %s772, 1
    %774 = vsyncpa [#allocation6], 1
    %775 = vsyncpa [#allocation9], 1
    %s776 = scalar_lea.sflag [#allocation9], 1
    %777 = vsyncpa %s776, 1
    %778 = vsyncpa [#allocation4], 1
    %s779 = scalar_lea.sflag [#allocation4], 1
    %780 = vsyncpa %s779, 1

</llo_original>
